<compile_context>
chip_gen: v7x
topology: tpu7x:2x2x1
jax: 0.10.0
libtpu: 0.0.40
codegen_flags: <defaults>
</compile_context>

<pallas_src>
import functools

import jax
import jax.numpy as jnp
from jax.experimental import pallas as pl
from jax.experimental.pallas import tpu as pltpu

# ----------------------------------------------------------------------------
# Hyperparameters (fixed stand-ins for optuna trial.suggest_* choices)
# ----------------------------------------------------------------------------
NUM_LAYERS = 3      # trial.suggest_int('mlp_num_layers', 2, 8)
HIDDEN_SIZE = 64    # trial.suggest_int('mlp_hidden_size', 64, 512, step=64)
INPUT_DIM = 32
OUTPUT_DIM = 8
BATCH = 8
BN_EPS = 1e-5


def _round_up(x, m):
    return (x + m - 1) // m * m


# Lane-dense padded feature width shared by every layer's K and N dims.
FEAT_PAD = _round_up(max(HIDDEN_SIZE, INPUT_DIM, OUTPUT_DIM), 128)
# Batch block (rows per grid step): >= 8 sublanes, capped at 256 (MXU height).
BM = min(_round_up(BATCH, 8), 256)


# ----------------------------------------------------------------------------
# Fused Pallas kernel: entire MLP forward in one body (statically unrolled)
# ----------------------------------------------------------------------------
def _fused_mlp_kernel(x_ref, w_ref, b_ref, o_ref, *, num_layers):
    """x_ref: (BM, FEAT_PAD) f32
       w_ref: (num_layers+1, FEAT_PAD, FEAT_PAD) bf16  (BN folded, zero-padded)
       b_ref: (num_layers+1, BM, FEAT_PAD) f32         (pre-broadcast biases)
       o_ref: (BM, FEAT_PAD) f32                       (lane-dense output)
    """
    h = x_ref[...]                                       # (BM, FEAT_PAD) f32
    for i in range(num_layers):
        # Linear + (folded) BatchNorm + ReLU: one MXU pass + one VPU pass.
        y = jnp.dot(h.astype(jnp.bfloat16), w_ref[i],
                    preferred_element_type=jnp.float32)
        h = jnp.maximum(y + b_ref[i], 0.0)
    y = jnp.dot(h.astype(jnp.bfloat16), w_ref[num_layers],
                preferred_element_type=jnp.float32)
    o_ref[...] = (y + b_ref[num_layers]).astype(o_ref.dtype)


def simple_mlp_forward(x, w_slab, b_slab):
    """x: (batch, INPUT_DIM) f32; w_slab: (L+1, FP, FP) bf16; b_slab: (L+1, BM, FP) f32."""
    batch, in_dim = x.shape
    num_layers = w_slab.shape[0] - 1
    bm = b_slab.shape[1]
    b_pad = _round_up(batch, bm)

    # Zero-pad x to a lane-dense (b_pad, FEAT_PAD) slab (exact: padded weight
    # rows are zero).
    xp = jnp.zeros((b_pad, FEAT_PAD), jnp.float32).at[:batch, :in_dim].set(x)

    kernel = functools.partial(_fused_mlp_kernel, num_layers=num_layers)
    out = pl.pallas_call(
        kernel,
        out_shape=jax.ShapeDtypeStruct((b_pad, FEAT_PAD), jnp.float32),
        grid_spec=pltpu.PrefetchScalarGridSpec(
            num_scalar_prefetch=0,
            grid=(b_pad // bm,),
            in_specs=[
                pl.BlockSpec((bm, FEAT_PAD), lambda i: (i, 0)),
                # Weight/bias slabs: constant index_map -> resident in VMEM.
                pl.BlockSpec((num_layers + 1, FEAT_PAD, FEAT_PAD),
                             lambda i: (0, 0, 0)),
                pl.BlockSpec((num_layers + 1, bm, FEAT_PAD),
                             lambda i: (0, 0, 0)),
            ],
            out_specs=pl.BlockSpec((bm, FEAT_PAD), lambda i: (i, 0)),
        ),
        compiler_params=pltpu.CompilerParams(
            dimension_semantics=("parallel",)),
    )(xp, w_slab, b_slab)
    return out[:batch, :OUTPUT_DIM]


# ----------------------------------------------------------------------------
# Parameter construction (deterministic, mirrors PyTorch __init__ shapes)
# ----------------------------------------------------------------------------
def init_params(key):
    """Raw (unfolded, unpadded) parameters, matching nn.Linear / nn.BatchNorm1d."""
    hidden = []
    in_dim = INPUT_DIM
    for _ in range(NUM_LAYERS):
        key, kw, kb = jax.random.split(key, 3)
        bound = 1.0 / jnp.sqrt(in_dim)
        w = jax.random.uniform(kw, (in_dim, HIDDEN_SIZE), jnp.float32, -bound, bound)
        b = jax.random.uniform(kb, (1, HIDDEN_SIZE), jnp.float32, -bound, bound)
        # BatchNorm1d defaults: gamma=1, beta=0, running_mean=0, running_var=1
        gamma = jnp.ones((1, HIDDEN_SIZE), jnp.float32)
        beta = jnp.zeros((1, HIDDEN_SIZE), jnp.float32)
        running_mean = jnp.zeros((1, HIDDEN_SIZE), jnp.float32)
        running_var = jnp.ones((1, HIDDEN_SIZE), jnp.float32)
        hidden.append((w, b, gamma, beta, running_mean, running_var))
        in_dim = HIDDEN_SIZE
    key, kw, kb = jax.random.split(key, 3)
    bound = 1.0 / jnp.sqrt(in_dim)
    w_out = jax.random.uniform(kw, (in_dim, OUTPUT_DIM), jnp.float32, -bound, bound)
    b_out = jax.random.uniform(kb, (1, OUTPUT_DIM), jnp.float32, -bound, bound)
    return hidden, (w_out, b_out)


def prepare_fused_params(hidden_params, out_params):
    """Fold eval-mode BN into each Linear, zero-pad to FEAT_PAD, and pack into
    a single bf16 weight slab + a single pre-broadcast f32 bias slab."""
    num_layers = len(hidden_params)
    w_slab = jnp.zeros((num_layers + 1, FEAT_PAD, FEAT_PAD), jnp.float32)
    b_slab = jnp.zeros((num_layers + 1, BM, FEAT_PAD), jnp.float32)
    for i, (w, b, gamma, beta, mean, var) in enumerate(hidden_params):
        scale = gamma / jnp.sqrt(var + BN_EPS)            # (1, H)
        shift = beta - mean * scale                       # (1, H)
        w_f = w * scale                                   # fold BN into weights
        b_f = b * scale + shift
        k, n = w_f.shape
        w_slab = w_slab.at[i, :k, :n].set(w_f)
        b_slab = b_slab.at[i, :, :n].set(jnp.broadcast_to(b_f, (BM, n)))
    w_out, b_out = out_params
    k, n = w_out.shape
    w_slab = w_slab.at[num_layers, :k, :n].set(w_out)
    b_slab = b_slab.at[num_layers, :, :n].set(jnp.broadcast_to(b_out, (BM, n)))
    return w_slab.astype(jnp.bfloat16), b_slab


# ----------------------------------------------------------------------------
# Main
# ----------------------------------------------------------------------------
if __name__ == "__main__":
    key = jax.random.PRNGKey(0)
    key, kx = jax.random.split(key)
    x = jax.random.normal(kx, (BATCH, INPUT_DIM), dtype=jnp.float32)

    hidden_params, out_params = init_params(key)
    w_slab, b_slab = prepare_fused_params(hidden_params, out_params)

    fwd = jax.jit(simple_mlp_forward)
    out = fwd(x, w_slab, b_slab)
    out = jax.block_until_ready(out)

    # Reference: plain JAX f32 with explicit eval-mode BatchNorm (unfolded).
    h_ref = x
    for (w, b, gamma, beta, mean, var) in hidden_params:
        y = h_ref @ w + b
        y = (y - mean) / jnp.sqrt(var + BN_EPS) * gamma + beta
        h_ref = jnp.maximum(y, 0.0)
    ref = h_ref @ out_params[0] + out_params[1]

    assert out.shape == (BATCH, OUTPUT_DIM)
    # bf16 weights -> loosened tolerance (weights rounded to ~3 decimal digits).
    assert jnp.allclose(out, ref, atol=5e-2, rtol=5e-2)

    print("KERNEL_OK")
</pallas_src>

<mosaic_0001>
module attributes {stable_mosaic.version = 11 : i64} {
  func.func @_fused_mlp_kernel(%arg0: i32, %arg1: memref<8x128xf32, #tpu.memory_space<vmem>>, %arg2: memref<4x128x128xbf16, #tpu.memory_space<vmem>>, %arg3: memref<4x8x128xf32, #tpu.memory_space<vmem>>, %arg4: memref<8x128xf32, #tpu.memory_space<vmem>>) attributes {dimension_semantics = [#tpu.dimension_semantics<parallel>], iteration_bounds = array<i64: 1>, scalar_prefetch = 0 : i64, scratch_operands = 0 : i64, tpu.core_type = #tpu.core_type<tc>, window_params = [{transform_indices = @transform_0, window_bounds = array<i64: 8, 128>}, {pipeline_mode = #tpu.pipeline_mode<synchronous>, transform_indices = @transform_1, window_bounds = array<i64: 4, 128, 128>}, {pipeline_mode = #tpu.pipeline_mode<synchronous>, transform_indices = @transform_2, window_bounds = array<i64: 4, 8, 128>}, {transform_indices = @transform_3, window_bounds = array<i64: 8, 128>}]} {
    %c0 = arith.constant 0 : index
    %c0_0 = arith.constant 0 : index
    %0 = vector.load %arg1[%c0, %c0_0] : memref<8x128xf32, #tpu.memory_space<vmem>>, vector<8x128xf32>
    %1 = arith.truncf %0 : vector<8x128xf32> to vector<8x128xbf16>
    %c0_1 = arith.constant 0 : index
    %c0_2 = arith.constant 0 : index
    %c0_3 = arith.constant 0 : index
    %2 = vector.load %arg2[%c0_1, %c0_2, %c0_3] : memref<4x128x128xbf16, #tpu.memory_space<vmem>>, vector<1x128x128xbf16>
    %3 = vector.shape_cast %2 : vector<1x128x128xbf16> to vector<128x128xbf16>
    %cst = arith.constant dense<0.000000e+00> : vector<8x128xf32>
    %4 = tpu.matmul %1, %3, %cst {dimension_numbers = #tpu.dot_dimension_numbers<[1], [0], [0], [1], [0, 0, 1, 1], [], []>} : vector<8x128xbf16>, vector<128x128xbf16>, vector<8x128xf32> -> vector<8x128xf32>
    %c0_4 = arith.constant 0 : index
    %c0_5 = arith.constant 0 : index
    %c0_6 = arith.constant 0 : index
    %5 = vector.load %arg3[%c0_4, %c0_5, %c0_6] : memref<4x8x128xf32, #tpu.memory_space<vmem>>, vector<1x8x128xf32>
    %6 = vector.shape_cast %5 : vector<1x8x128xf32> to vector<8x128xf32>
    %7 = arith.addf %4, %6 : vector<8x128xf32>
    %cst_7 = arith.constant 0.000000e+00 : f32
    %8 = vector.broadcast %cst_7 : f32 to vector<8x128xf32>
    %9 = arith.maximumf %7, %8 : vector<8x128xf32>
    %10 = arith.truncf %9 : vector<8x128xf32> to vector<8x128xbf16>
    %c1 = arith.constant 1 : index
    %c0_8 = arith.constant 0 : index
    %c0_9 = arith.constant 0 : index
    %11 = vector.load %arg2[%c1, %c0_8, %c0_9] : memref<4x128x128xbf16, #tpu.memory_space<vmem>>, vector<1x128x128xbf16>
    %12 = vector.shape_cast %11 : vector<1x128x128xbf16> to vector<128x128xbf16>
    %cst_10 = arith.constant dense<0.000000e+00> : vector<8x128xf32>
    %13 = tpu.matmul %10, %12, %cst_10 {dimension_numbers = #tpu.dot_dimension_numbers<[1], [0], [0], [1], [0, 0, 1, 1], [], []>} : vector<8x128xbf16>, vector<128x128xbf16>, vector<8x128xf32> -> vector<8x128xf32>
    %c1_11 = arith.constant 1 : index
    %c0_12 = arith.constant 0 : index
    %c0_13 = arith.constant 0 : index
    %14 = vector.load %arg3[%c1_11, %c0_12, %c0_13] : memref<4x8x128xf32, #tpu.memory_space<vmem>>, vector<1x8x128xf32>
    %15 = vector.shape_cast %14 : vector<1x8x128xf32> to vector<8x128xf32>
    %16 = arith.addf %13, %15 : vector<8x128xf32>
    %cst_14 = arith.constant 0.000000e+00 : f32
    %17 = vector.broadcast %cst_14 : f32 to vector<8x128xf32>
    %18 = arith.maximumf %16, %17 : vector<8x128xf32>
    %19 = arith.truncf %18 : vector<8x128xf32> to vector<8x128xbf16>
    %c2 = arith.constant 2 : index
    %c0_15 = arith.constant 0 : index
    %c0_16 = arith.constant 0 : index
    %20 = vector.load %arg2[%c2, %c0_15, %c0_16] : memref<4x128x128xbf16, #tpu.memory_space<vmem>>, vector<1x128x128xbf16>
    %21 = vector.shape_cast %20 : vector<1x128x128xbf16> to vector<128x128xbf16>
    %cst_17 = arith.constant dense<0.000000e+00> : vector<8x128xf32>
    %22 = tpu.matmul %19, %21, %cst_17 {dimension_numbers = #tpu.dot_dimension_numbers<[1], [0], [0], [1], [0, 0, 1, 1], [], []>} : vector<8x128xbf16>, vector<128x128xbf16>, vector<8x128xf32> -> vector<8x128xf32>
    %c2_18 = arith.constant 2 : index
    %c0_19 = arith.constant 0 : index
    %c0_20 = arith.constant 0 : index
    %23 = vector.load %arg3[%c2_18, %c0_19, %c0_20] : memref<4x8x128xf32, #tpu.memory_space<vmem>>, vector<1x8x128xf32>
    %24 = vector.shape_cast %23 : vector<1x8x128xf32> to vector<8x128xf32>
    %25 = arith.addf %22, %24 : vector<8x128xf32>
    %cst_21 = arith.constant 0.000000e+00 : f32
    %26 = vector.broadcast %cst_21 : f32 to vector<8x128xf32>
    %27 = arith.maximumf %25, %26 : vector<8x128xf32>
    %28 = arith.truncf %27 : vector<8x128xf32> to vector<8x128xbf16>
    %c3 = arith.constant 3 : index
    %c0_22 = arith.constant 0 : index
    %c0_23 = arith.constant 0 : index
    %29 = vector.load %arg2[%c3, %c0_22, %c0_23] : memref<4x128x128xbf16, #tpu.memory_space<vmem>>, vector<1x128x128xbf16>
    %30 = vector.shape_cast %29 : vector<1x128x128xbf16> to vector<128x128xbf16>
    %cst_24 = arith.constant dense<0.000000e+00> : vector<8x128xf32>
    %31 = tpu.matmul %28, %30, %cst_24 {dimension_numbers = #tpu.dot_dimension_numbers<[1], [0], [0], [1], [0, 0, 1, 1], [], []>} : vector<8x128xbf16>, vector<128x128xbf16>, vector<8x128xf32> -> vector<8x128xf32>
    %c3_25 = arith.constant 3 : index
    %c0_26 = arith.constant 0 : index
    %c0_27 = arith.constant 0 : index
    %32 = vector.load %arg3[%c3_25, %c0_26, %c0_27] : memref<4x8x128xf32, #tpu.memory_space<vmem>>, vector<1x8x128xf32>
    %33 = vector.shape_cast %32 : vector<1x8x128xf32> to vector<8x128xf32>
    %34 = arith.addf %31, %33 : vector<8x128xf32>
    %c0_28 = arith.constant 0 : index
    %c0_29 = arith.constant 0 : index
    %35 = vector.load %arg4[%c0_28, %c0_29] : memref<8x128xf32, #tpu.memory_space<vmem>>, vector<8x128xf32>
    tpu.vector_store %arg4[%c0_28, %c0_29], %34 {strides = array<i32>} : memref<8x128xf32, #tpu.memory_space<vmem>>, vector<8x128xf32>,
    return
  }
  func.func @transform_0(%arg0: i32) -> (i32, i32) {
    %c0_i32 = arith.constant 0 : i32
    %c0_i32_0 = arith.constant 0 : i32
    return %arg0, %c0_i32 : i32, i32
  }
  func.func @transform_1(%arg0: i32) -> (i32, i32, i32) {
    %c0_i32 = arith.constant 0 : i32
    %c0_i32_0 = arith.constant 0 : i32
    %c0_i32_1 = arith.constant 0 : i32
    %c0_i32_2 = arith.constant 0 : i32
    return %c0_i32, %c0_i32_0, %c0_i32_1 : i32, i32, i32
  }
  func.func @transform_2(%arg0: i32) -> (i32, i32, i32) {
    %c0_i32 = arith.constant 0 : i32
    %c0_i32_0 = arith.constant 0 : i32
    %c0_i32_1 = arith.constant 0 : i32
    %c0_i32_2 = arith.constant 0 : i32
    return %c0_i32, %c0_i32_0, %c0_i32_1 : i32, i32, i32
  }
  func.func @transform_3(%arg0: i32) -> (i32, i32) {
    %c0_i32 = arith.constant 0 : i32
    %c0_i32_0 = arith.constant 0 : i32
    return %arg0, %c0_i32 : i32, i32
  }
}

</mosaic_0001>

<llo_original>
// kernel: simple_mlp_forward.1
$region0: #{simple_mlp_forward.1}
  #allocation0 [shape = 'u32[]', space=smem, size = 0x4, offset = 0x4, fixed_abs, tag = 'smem constant byte address 0x4 - core index']
  #allocation1 [shape = 'u32[144,128]{1,0:T(1,128)}', space=vmem, size = 0x12000, scoped, tag = 'internal scratch']
  %s0 = inlined_call_operand.vmem [shape: f32[8,128], index: 0, kind: input, shape index: {}]
  %s1 = inlined_call_operand.hbm [shape: bf16[4,128,128], index: 1, kind: input, shape index: {}]
  %s2 = inlined_call_operand.vmem [shape: f32[4,8,128], index: 2, kind: input, shape index: {}]
  %s3 = inlined_call_operand.hbm [shape: f32[8,128], index: 3, kind: output, shape index: {}]
  %s4 = sld [smem:[#allocation0]]
  $region26: #{simple_mlp_forward.1} parent=0
    _
  %s6 = ssub.s32 1, %s4
  %s7 = scalar_select 0, %s6, %s4
  $region1: #{simple_mlp_forward.1} parent=0
    #allocation2 [shape = 'u8[131072]{0}', space=vmem, size = 0x20000, scoped, tag = 'input window, operand 1, single buffered']
    #allocation3 [shape = 's32[1]{0}', space=sflag, size = 0x4, scoped, tag = 'scoped memory for simple_mlp_forward.1']
    #allocation4 [shape = 's32[1]{0}', space=sflag, size = 0x4, scoped, tag = 'scoped memory for simple_mlp_forward.1']
    #allocation5 [shape = 'u8[4096]{0}', space=vmem, size = 0x1000, scoped, tag = 'output window, operand 0, single buffered']
    %8 = vsyncpa [#allocation3], 0
    %9 = vsyncpa [#allocation4], 0
    // Predicated region
    $region2: #{simple_mlp_forward.1} parent=1 // pred_check
      _
    $region3: #{simple_mlp_forward.1} parent=1 // pred_check_branch
      %11 = sbr.rel (0) target = $region5
    $region4: #{simple_mlp_forward.1} parent=1 // pred_region
      _
    $region5: #{simple_mlp_forward.1} parent=1 // pred_fallthru
      _
    // Predicated region
    $region6: #{simple_mlp_forward.1} parent=1 // pred_check
      _
    $region7: #{simple_mlp_forward.1} parent=1 // pred_check_branch
      %13 = sbr.rel (0) target = $region9
    $region8: #{simple_mlp_forward.1} parent=1 // pred_region
      %s15 = ssub.s32 4096, 4096
      %16 = vsyncadd [#allocation3], %s15
      %s17 = sshll.u32 [#allocation2], 4
      %s18 = int_to_ptr.vmem [resolvable:$true] %s17
      %23 = dma.hbm_to_vmem [thread:$0]  %s1, 4096, %s18, [#allocation3], 64, 64, 4
    $region9: #{simple_mlp_forward.1} parent=1 // pred_fallthru
      _
    // Predicated region
    $region10: #{simple_mlp_forward.1} parent=1 // pred_check
      _
    $region11: #{simple_mlp_forward.1} parent=1 // pred_check_branch
      %25 = sbr.rel (0) target = $region13
    $region12: #{simple_mlp_forward.1} parent=1 // pred_region
      _
    $region13: #{simple_mlp_forward.1} parent=1 // pred_fallthru
      _
    // Predicated region
    $region14: #{simple_mlp_forward.1} parent=1 // pred_check
      _
    $region15: #{simple_mlp_forward.1} parent=1 // pred_check_branch
      %27 = sbr.rel (0) target = $region17
    $region16: #{simple_mlp_forward.1} parent=1 // pred_region
      %28 = dma.done [#allocation3], 4096
    $region17: #{simple_mlp_forward.1} parent=1 // pred_fallthru
      _
    %v30 = vld [vmem:[%s0] sm:$0xff]
    %v31 = vpack.c.bf16 %v30, %v30
    %v32 = vld [vmem:[#allocation2] sm:$0xf]
    %v33 = vld [vmem:[#allocation2 + $0x4] sm:$0xf]
    %v34 = vld [vmem:[#allocation2 + $0x8] sm:$0xf]
    %v35 = vld [vmem:[#allocation2 + $0xc] sm:$0xf]
    %v36 = vld [vmem:[#allocation2 + $0x10] sm:$0xf]
    %v37 = vld [vmem:[#allocation2 + $0x14] sm:$0xf]
    %v38 = vld [vmem:[#allocation2 + $0x18] sm:$0xf]
    %v39 = vld [vmem:[#allocation2 + $0x1c] sm:$0xf]
    %v40 = vld [vmem:[#allocation2 + $0x20] sm:$0xf]
    %v41 = vld [vmem:[#allocation2 + $0x24] sm:$0xf]
    %v42 = vld [vmem:[#allocation2 + $0x28] sm:$0xf]
    %v43 = vld [vmem:[#allocation2 + $0x2c] sm:$0xf]
    %v44 = vld [vmem:[#allocation2 + $0x30] sm:$0xf]
    %v45 = vld [vmem:[#allocation2 + $0x34] sm:$0xf]
    %v46 = vld [vmem:[#allocation2 + $0x38] sm:$0xf]
    %v47 = vld [vmem:[#allocation2 + $0x3c] sm:$0xf]
    %v48 = vld [vmem:[%s2] sm:$0xff]
    %v65 = vunpack.c.l.b16 %v32
    %v66 = vunpack.c.l.b16 %v33
    %v67 = vunpack.c.l.b16 %v34
    %v68 = vunpack.c.l.b16 %v35
    %v69 = vunpack.c.l.b16 %v36
    %v70 = vunpack.c.l.b16 %v37
    %v71 = vunpack.c.l.b16 %v38
    %v72 = vunpack.c.l.b16 %v39
    %v73 = vunpack.c.l.b16 %v40
    %v74 = vunpack.c.l.b16 %v41
    %v75 = vunpack.c.l.b16 %v42
    %v76 = vunpack.c.l.b16 %v43
    %v77 = vunpack.c.l.b16 %v44
    %v78 = vunpack.c.l.b16 %v45
    %v79 = vunpack.c.l.b16 %v46
    %v80 = vunpack.c.l.b16 %v47
    %v81 = vpack.c.b16 %v66, %v65
    %v82 = vpack.c.b16 %v68, %v67
    %v83 = vpack.c.b16 %v70, %v69
    %v84 = vpack.c.b16 %v72, %v71
    %v85 = vpack.c.b16 %v74, %v73
    %v86 = vpack.c.b16 %v76, %v75
    %v87 = vpack.c.b16 %v78, %v77
    %v88 = vpack.c.b16 %v80, %v79
    %97 = vmatprep.subr.bf16.mxu0 0
    %98 = vmatpush1.bf16.msra.mxu0 %v81
    %99 = vmatprep.subr.bf16.mxu0 0
    %100 = vmatpush1.bf16.msra.mxu0 %v82
    %101 = vmatprep.subr.bf16.mxu0 0
    %102 = vmatpush1.bf16.msra.mxu0 %v83
    %103 = vmatprep.subr.bf16.mxu0 0
    %104 = vmatpush1.bf16.msra.mxu0 %v84
    %105 = vmatprep.subr.bf16.mxu0 0
    %106 = vmatpush1.bf16.msra.mxu0 %v85
    %107 = vmatprep.subr.bf16.mxu0 0
    %108 = vmatpush1.bf16.msra.mxu0 %v86
    %109 = vmatprep.subr.bf16.mxu0 0
    %110 = vmatpush1.bf16.msra.mxu0 %v87
    %111 = vmatprep.subr.bf16.mxu0 0
    %112 = vmatpush1.bf16.msra.mxu0 %v88
    %113 = vmatprep.subr.bf16.mxu0 0
    %114 = vmatpush1.bf16.msra.mxu0 0
    %115 = vmatprep.subr.bf16.mxu0 0
    %116 = vmatpush1.bf16.msra.mxu0 0
    %117 = vmatprep.subr.bf16.mxu0 0
    %118 = vmatpush1.bf16.msra.mxu0 0
    %119 = vmatprep.subr.bf16.mxu0 0
    %120 = vmatpush1.bf16.msra.mxu0 0
    %121 = vmatprep.subr.bf16.mxu0 0
    %122 = vmatpush1.bf16.msra.mxu0 0
    %123 = vmatprep.subr.bf16.mxu0 0
    %124 = vmatpush1.bf16.msra.mxu0 0
    %125 = vmatprep.subr.bf16.mxu0 0
    %126 = vmatpush1.bf16.msra.mxu0 0
    %127 = vmatprep.subr.bf16.mxu0 0
    %128 = vmatpush1.bf16.msra.mxu0 0
    %129 = vmatprep.mubr.bf16.mxu0 0
    %130 = vmatmul.mubr.bf16.gmra.mrb[0].mxu0 %v31
    %v131 = vpop.f32.mrb[0].mxu0
    %v132 = vadd.f32 %v48, %v131
    %v133 = vpop.f32.mrb[0].mxu0
    %v134 = vpop.f32.mrb[0].mxu0
    %v135 = vpop.f32.mrb[0].mxu0
    %136 = vdwg.mxu0
    %v137 = vmax.f32 %v132, 0.0
    %v138 = vpack.c.bf16 %v137, %v137
    %s139 = scalar_lea.vmem [#allocation2], 64
    %v140 = vld [vmem:[%s139] sm:$0xf]
    %v141 = vld [vmem:[%s139 + $0x4] sm:$0xf]
    %v142 = vld [vmem:[%s139 + $0x8] sm:$0xf]
    %v143 = vld [vmem:[%s139 + $0xc] sm:$0xf]
    %v144 = vld [vmem:[%s139 + $0x10] sm:$0xf]
    %v145 = vld [vmem:[%s139 + $0x14] sm:$0xf]
    %v146 = vld [vmem:[%s139 + $0x18] sm:$0xf]
    %v147 = vld [vmem:[%s139 + $0x1c] sm:$0xf]
    %v148 = vld [vmem:[%s139 + $0x20] sm:$0xf]
    %v149 = vld [vmem:[%s139 + $0x24] sm:$0xf]
    %v150 = vld [vmem:[%s139 + $0x28] sm:$0xf]
    %v151 = vld [vmem:[%s139 + $0x2c] sm:$0xf]
    %v152 = vld [vmem:[%s139 + $0x30] sm:$0xf]
    %v153 = vld [vmem:[%s139 + $0x34] sm:$0xf]
    %v154 = vld [vmem:[%s139 + $0x38] sm:$0xf]
    %v155 = vld [vmem:[%s139 + $0x3c] sm:$0xf]
    %s156 = scalar_lea.vmem %s2, 8
    %v157 = vld [vmem:[%s156] sm:$0xff]
    %v174 = vunpack.c.l.b16 %v140
    %v175 = vunpack.c.l.b16 %v141
    %v176 = vunpack.c.l.b16 %v142
    %v177 = vunpack.c.l.b16 %v143
    %v178 = vunpack.c.l.b16 %v144
    %v179 = vunpack.c.l.b16 %v145
    %v180 = vunpack.c.l.b16 %v146
    %v181 = vunpack.c.l.b16 %v147
    %v182 = vunpack.c.l.b16 %v148
    %v183 = vunpack.c.l.b16 %v149
    %v184 = vunpack.c.l.b16 %v150
    %v185 = vunpack.c.l.b16 %v151
    %v186 = vunpack.c.l.b16 %v152
    %v187 = vunpack.c.l.b16 %v153
    %v188 = vunpack.c.l.b16 %v154
    %v189 = vunpack.c.l.b16 %v155
    %v190 = vpack.c.b16 %v175, %v174
    %v191 = vpack.c.b16 %v177, %v176
    %v192 = vpack.c.b16 %v179, %v178
    %v193 = vpack.c.b16 %v181, %v180
    %v194 = vpack.c.b16 %v183, %v182
    %v195 = vpack.c.b16 %v185, %v184
    %v196 = vpack.c.b16 %v187, %v186
    %v197 = vpack.c.b16 %v189, %v188
    %206 = vmatprep.subr.bf16.mxu0 0
    %207 = vmatpush1.bf16.msra.mxu0 %v190
    %208 = vmatprep.subr.bf16.mxu0 0
    %209 = vmatpush1.bf16.msra.mxu0 %v191
    %210 = vmatprep.subr.bf16.mxu0 0
    %211 = vmatpush1.bf16.msra.mxu0 %v192
    %212 = vmatprep.subr.bf16.mxu0 0
    %213 = vmatpush1.bf16.msra.mxu0 %v193
    %214 = vmatprep.subr.bf16.mxu0 0
    %215 = vmatpush1.bf16.msra.mxu0 %v194
    %216 = vmatprep.subr.bf16.mxu0 0
    %217 = vmatpush1.bf16.msra.mxu0 %v195
    %218 = vmatprep.subr.bf16.mxu0 0
    %219 = vmatpush1.bf16.msra.mxu0 %v196
    %220 = vmatprep.subr.bf16.mxu0 0
    %221 = vmatpush1.bf16.msra.mxu0 %v197
    %222 = vmatprep.subr.bf16.mxu0 0
    %223 = vmatpush1.bf16.msra.mxu0 0
    %224 = vmatprep.subr.bf16.mxu0 0
    %225 = vmatpush1.bf16.msra.mxu0 0
    %226 = vmatprep.subr.bf16.mxu0 0
    %227 = vmatpush1.bf16.msra.mxu0 0
    %228 = vmatprep.subr.bf16.mxu0 0
    %229 = vmatpush1.bf16.msra.mxu0 0
    %230 = vmatprep.subr.bf16.mxu0 0
    %231 = vmatpush1.bf16.msra.mxu0 0
    %232 = vmatprep.subr.bf16.mxu0 0
    %233 = vmatpush1.bf16.msra.mxu0 0
    %234 = vmatprep.subr.bf16.mxu0 0
    %235 = vmatpush1.bf16.msra.mxu0 0
    %236 = vmatprep.subr.bf16.mxu0 0
    %237 = vmatpush1.bf16.msra.mxu0 0
    %238 = vmatprep.mubr.bf16.mxu0 0
    %239 = vmatmul.mubr.bf16.gmra.mrb[0].mxu0 %v138
    %v240 = vpop.f32.mrb[0].mxu0
    %v241 = vadd.f32 %v157, %v240
    %v242 = vpop.f32.mrb[0].mxu0
    %v243 = vpop.f32.mrb[0].mxu0
    %v244 = vpop.f32.mrb[0].mxu0
    %245 = vdwg.mxu0
    %v246 = vmax.f32 %v241, 0.0
    %v247 = vpack.c.bf16 %v246, %v246
    %s248 = scalar_lea.vmem [#allocation2], 128
    %v249 = vld [vmem:[%s248] sm:$0xf]
    %v250 = vld [vmem:[%s248 + $0x4] sm:$0xf]
    %v251 = vld [vmem:[%s248 + $0x8] sm:$0xf]
    %v252 = vld [vmem:[%s248 + $0xc] sm:$0xf]
    %v253 = vld [vmem:[%s248 + $0x10] sm:$0xf]
    %v254 = vld [vmem:[%s248 + $0x14] sm:$0xf]
    %v255 = vld [vmem:[%s248 + $0x18] sm:$0xf]
    %v256 = vld [vmem:[%s248 + $0x1c] sm:$0xf]
    %v257 = vld [vmem:[%s248 + $0x20] sm:$0xf]
    %v258 = vld [vmem:[%s248 + $0x24] sm:$0xf]
    %v259 = vld [vmem:[%s248 + $0x28] sm:$0xf]
    %v260 = vld [vmem:[%s248 + $0x2c] sm:$0xf]
    %v261 = vld [vmem:[%s248 + $0x30] sm:$0xf]
    %v262 = vld [vmem:[%s248 + $0x34] sm:$0xf]
    %v263 = vld [vmem:[%s248 + $0x38] sm:$0xf]
    %v264 = vld [vmem:[%s248 + $0x3c] sm:$0xf]
    %s265 = scalar_lea.vmem %s2, 16
    %v266 = vld [vmem:[%s265] sm:$0xff]
    %v283 = vunpack.c.l.b16 %v249
    %v284 = vunpack.c.l.b16 %v250
    %v285 = vunpack.c.l.b16 %v251
    %v286 = vunpack.c.l.b16 %v252
    %v287 = vunpack.c.l.b16 %v253
    %v288 = vunpack.c.l.b16 %v254
    %v289 = vunpack.c.l.b16 %v255
    %v290 = vunpack.c.l.b16 %v256
    %v291 = vunpack.c.l.b16 %v257
    %v292 = vunpack.c.l.b16 %v258
    %v293 = vunpack.c.l.b16 %v259
    %v294 = vunpack.c.l.b16 %v260
    %v295 = vunpack.c.l.b16 %v261
    %v296 = vunpack.c.l.b16 %v262
    %v297 = vunpack.c.l.b16 %v263
    %v298 = vunpack.c.l.b16 %v264
    %v299 = vpack.c.b16 %v284, %v283
    %v300 = vpack.c.b16 %v286, %v285
    %v301 = vpack.c.b16 %v288, %v287
    %v302 = vpack.c.b16 %v290, %v289
    %v303 = vpack.c.b16 %v292, %v291
    %v304 = vpack.c.b16 %v294, %v293
    %v305 = vpack.c.b16 %v296, %v295
    %v306 = vpack.c.b16 %v298, %v297
    %315 = vmatprep.subr.bf16.mxu0 0
    %316 = vmatpush1.bf16.msra.mxu0 %v299
    %317 = vmatprep.subr.bf16.mxu0 0
    %318 = vmatpush1.bf16.msra.mxu0 %v300
    %319 = vmatprep.subr.bf16.mxu0 0
    %320 = vmatpush1.bf16.msra.mxu0 %v301
    %321 = vmatprep.subr.bf16.mxu0 0
    %322 = vmatpush1.bf16.msra.mxu0 %v302
    %323 = vmatprep.subr.bf16.mxu0 0
    %324 = vmatpush1.bf16.msra.mxu0 %v303
    %325 = vmatprep.subr.bf16.mxu0 0
    %326 = vmatpush1.bf16.msra.mxu0 %v304
    %327 = vmatprep.subr.bf16.mxu0 0
    %328 = vmatpush1.bf16.msra.mxu0 %v305
    %329 = vmatprep.subr.bf16.mxu0 0
    %330 = vmatpush1.bf16.msra.mxu0 %v306
    %331 = vmatprep.subr.bf16.mxu0 0
    %332 = vmatpush1.bf16.msra.mxu0 0
    %333 = vmatprep.subr.bf16.mxu0 0
    %334 = vmatpush1.bf16.msra.mxu0 0
    %335 = vmatprep.subr.bf16.mxu0 0
    %336 = vmatpush1.bf16.msra.mxu0 0
    %337 = vmatprep.subr.bf16.mxu0 0
    %338 = vmatpush1.bf16.msra.mxu0 0
    %339 = vmatprep.subr.bf16.mxu0 0
    %340 = vmatpush1.bf16.msra.mxu0 0
    %341 = vmatprep.subr.bf16.mxu0 0
    %342 = vmatpush1.bf16.msra.mxu0 0
    %343 = vmatprep.subr.bf16.mxu0 0
    %344 = vmatpush1.bf16.msra.mxu0 0
    %345 = vmatprep.subr.bf16.mxu0 0
    %346 = vmatpush1.bf16.msra.mxu0 0
    %347 = vmatprep.mubr.bf16.mxu0 0
    %348 = vmatmul.mubr.bf16.gmra.mrb[0].mxu0 %v247
    %v349 = vpop.f32.mrb[0].mxu0
    %v350 = vadd.f32 %v266, %v349
    %v351 = vpop.f32.mrb[0].mxu0
    %v352 = vpop.f32.mrb[0].mxu0
    %v353 = vpop.f32.mrb[0].mxu0
    %354 = vdwg.mxu0
    %v355 = vmax.f32 %v350, 0.0
    %v356 = vpack.c.bf16 %v355, %v355
    %s357 = scalar_lea.vmem [#allocation2], 192
    %v358 = vld [vmem:[%s357] sm:$0xf]
    %v359 = vld [vmem:[%s357 + $0x4] sm:$0xf]
    %v360 = vld [vmem:[%s357 + $0x8] sm:$0xf]
    %v361 = vld [vmem:[%s357 + $0xc] sm:$0xf]
    %v362 = vld [vmem:[%s357 + $0x10] sm:$0xf]
    %v363 = vld [vmem:[%s357 + $0x14] sm:$0xf]
    %v364 = vld [vmem:[%s357 + $0x18] sm:$0xf]
    %v365 = vld [vmem:[%s357 + $0x1c] sm:$0xf]
    %v366 = vld [vmem:[%s357 + $0x20] sm:$0xf]
    %v367 = vld [vmem:[%s357 + $0x24] sm:$0xf]
    %v368 = vld [vmem:[%s357 + $0x28] sm:$0xf]
    %v369 = vld [vmem:[%s357 + $0x2c] sm:$0xf]
    %v370 = vld [vmem:[%s357 + $0x30] sm:$0xf]
    %v371 = vld [vmem:[%s357 + $0x34] sm:$0xf]
    %v372 = vld [vmem:[%s357 + $0x38] sm:$0xf]
    %v373 = vld [vmem:[%s357 + $0x3c] sm:$0xf]
    %s374 = scalar_lea.vmem %s2, 24
    %v375 = vld [vmem:[%s374] sm:$0xff]
    %v392 = vunpack.c.l.b16 %v358
    %v393 = vunpack.c.l.b16 %v359
    %v394 = vunpack.c.l.b16 %v360
    %v395 = vunpack.c.l.b16 %v361
    %v396 = vunpack.c.l.b16 %v362
    %v397 = vunpack.c.l.b16 %v363
    %v398 = vunpack.c.l.b16 %v364
    %v399 = vunpack.c.l.b16 %v365
    %v400 = vunpack.c.l.b16 %v366
    %v401 = vunpack.c.l.b16 %v367
    %v402 = vunpack.c.l.b16 %v368
    %v403 = vunpack.c.l.b16 %v369
    %v404 = vunpack.c.l.b16 %v370
    %v405 = vunpack.c.l.b16 %v371
    %v406 = vunpack.c.l.b16 %v372
    %v407 = vunpack.c.l.b16 %v373
    %v408 = vpack.c.b16 %v393, %v392
    %v409 = vpack.c.b16 %v395, %v394
    %v410 = vpack.c.b16 %v397, %v396
    %v411 = vpack.c.b16 %v399, %v398
    %v412 = vpack.c.b16 %v401, %v400
    %v413 = vpack.c.b16 %v403, %v402
    %v414 = vpack.c.b16 %v405, %v404
    %v415 = vpack.c.b16 %v407, %v406
    %424 = vmatprep.subr.bf16.mxu0 0
    %425 = vmatpush1.bf16.msra.mxu0 %v408
    %426 = vmatprep.subr.bf16.mxu0 0
    %427 = vmatpush1.bf16.msra.mxu0 %v409
    %428 = vmatprep.subr.bf16.mxu0 0
    %429 = vmatpush1.bf16.msra.mxu0 %v410
    %430 = vmatprep.subr.bf16.mxu0 0
    %431 = vmatpush1.bf16.msra.mxu0 %v411
    %432 = vmatprep.subr.bf16.mxu0 0
    %433 = vmatpush1.bf16.msra.mxu0 %v412
    %434 = vmatprep.subr.bf16.mxu0 0
    %435 = vmatpush1.bf16.msra.mxu0 %v413
    %436 = vmatprep.subr.bf16.mxu0 0
    %437 = vmatpush1.bf16.msra.mxu0 %v414
    %438 = vmatprep.subr.bf16.mxu0 0
    %439 = vmatpush1.bf16.msra.mxu0 %v415
    %440 = vmatprep.subr.bf16.mxu0 0
    %441 = vmatpush1.bf16.msra.mxu0 0
    %442 = vmatprep.subr.bf16.mxu0 0
    %443 = vmatpush1.bf16.msra.mxu0 0
    %444 = vmatprep.subr.bf16.mxu0 0
    %445 = vmatpush1.bf16.msra.mxu0 0
    %446 = vmatprep.subr.bf16.mxu0 0
    %447 = vmatpush1.bf16.msra.mxu0 0
    %448 = vmatprep.subr.bf16.mxu0 0
    %449 = vmatpush1.bf16.msra.mxu0 0
    %450 = vmatprep.subr.bf16.mxu0 0
    %451 = vmatpush1.bf16.msra.mxu0 0
    %452 = vmatprep.subr.bf16.mxu0 0
    %453 = vmatpush1.bf16.msra.mxu0 0
    %454 = vmatprep.subr.bf16.mxu0 0
    %455 = vmatpush1.bf16.msra.mxu0 0
    %456 = vmatprep.mubr.bf16.mxu0 0
    %457 = vmatmul.mubr.bf16.gmra.mrb[0].mxu0 %v356
    %v458 = vpop.f32.mrb[0].mxu0
    %v459 = vadd.f32 %v375, %v458
    %v460 = vpop.f32.mrb[0].mxu0
    %v461 = vpop.f32.mrb[0].mxu0
    %v462 = vpop.f32.mrb[0].mxu0
    %463 = vdwg.mxu0
    %464 = vst [vmem:[#allocation5] sm:$0xff] %v459
    // Predicated region
    $region18: #{simple_mlp_forward.1} parent=1 // pred_check
      _
    $region19: #{simple_mlp_forward.1} parent=1 // pred_check_branch
      %466 = sbr.rel (0) target = $region21
    $region20: #{simple_mlp_forward.1} parent=1 // pred_region
      %s468 = ssub.s32 128, 128
      %469 = vsyncadd [#allocation4], %s468
      %s471 = sshll.u32 [#allocation5], 4
      %s472 = int_to_ptr.vmem [resolvable:$true] %s471
      %474 = dma.vmem_to_hbm [thread:$0]  %s472, 128, %s3, [#allocation4]
    $region21: #{simple_mlp_forward.1} parent=1 // pred_fallthru
      _
    // Predicated region
    $region22: #{simple_mlp_forward.1} parent=1 // pred_check
      _
    $region23: #{simple_mlp_forward.1} parent=1 // pred_check_branch
      %476 = sbr.rel (0) target = $region25
    $region24: #{simple_mlp_forward.1} parent=1 // pred_region
      %477 = dma.done [#allocation4], 128
    $region25: #{simple_mlp_forward.1} parent=1 // pred_fallthru
      _
    %478 = vsyncpa [#allocation3], 1
    %479 = vsyncpa [#allocation4], 1

</llo_original>
